<compile_context>
chip_gen: v7x
topology: tpu7x:2x2x1
jax: 0.10.0
libtpu: 0.0.40
codegen_flags: <defaults>
</compile_context>

<pallas_src>
import math
import functools

import numpy as np
import jax
import jax.numpy as jnp
from jax.experimental import pallas as pl
from jax.experimental.pallas import tpu as pltpu


# ----------------------------------------------------------------------------
# "cfg" constants (deterministic stand-in for the Hydra/YACS config object)
# ----------------------------------------------------------------------------
PRED_TIME = 0.8
FREQUENCY = 10.0
PRED_LEN = math.ceil(PRED_TIME * FREQUENCY)          # = 8
LOSS_FUN = "MSE"                                     # "MSE" | "RMSE" | "SmoothL1"
WEIGHTED_PENALTY = "linear"                          # False | linear | quadratic | exponential | parabolic
START_WEIGHT = 0.5
END_WEIGHT = 2.0
MIN_WEIGHT = 0.5
MAX_WEIGHT = 2.0

_SMALL_BYTES = 1 << 20          # below this, a single XLA fusion beats the kernel


def make_weights():
    """Deterministic re-implementation of Loss.__init__ weight construction."""
    if not WEIGHTED_PENALTY:
        return None
    if WEIGHTED_PENALTY == "linear":
        w = jnp.linspace(START_WEIGHT, END_WEIGHT, PRED_LEN)
    elif WEIGHTED_PENALTY == "quadratic":
        w = jnp.linspace(START_WEIGHT, END_WEIGHT, PRED_LEN) ** 2
    elif WEIGHTED_PENALTY == "exponential":
        w = jnp.exp(jnp.linspace(math.log(START_WEIGHT), math.log(END_WEIGHT), PRED_LEN))
    elif WEIGHTED_PENALTY == "parabolic":
        x = jnp.linspace(-1.0, 1.0, PRED_LEN)
        w = (MAX_WEIGHT - MIN_WEIGHT) * x**2 + MIN_WEIGHT
    else:
        raise ValueError(WEIGHTED_PENALTY)
    return w.astype(jnp.float32)


# ----------------------------------------------------------------------------
# Row-block sizing over the (sublane) batch axis.
# ----------------------------------------------------------------------------
def _pick_rows(B, pred_itemsize, tgt_itemsize, lane_pred):
    row_bytes = lane_pred * pred_itemsize
    rows = (3 << 19) // max(row_bytes, 1)                   # ~1.5 MiB of pred per step
    padded_row = 2 * 128 * (pred_itemsize + tgt_itemsize)   # 2x double-buffer, lanes pad to 128
    rows = min(rows, (8 << 20) // padded_row)               # keep VMEM under ~8 MiB
    rows = max(8, (rows // 8) * 8)
    if rows >= B:
        return B, 1                                         # single full-B block
    return rows, -(-B // rows)                              # (block_rows, num_blocks)


# ----------------------------------------------------------------------------
# Pallas kernel
#   pred_ref : (bb, K*2T)  native dtype   (lane l = k*2T + 2t + c)
#   tgt_ref  : (bb, 2T)    native dtype   (lane l = 2t + c)
#   [pair_ref: (2T, T) f32 0/1  -- RMSE only: pairs x/y lanes per time step]
#   w_ref    : (1, 2T) or (1, T) f32      (per-time weight * reduction scale)
#   out_ref  : (8, 128) f32               (resident accumulator tile)
# ----------------------------------------------------------------------------
def _loss_kernel(*refs, K, T, B, bb, loss_fun, k_pred, needs_mask):
    twoT = 2 * T
    if loss_fun == "RMSE":
        pred_ref, tgt_ref, pair_ref, w_ref, out_ref = refs
    else:
        pred_ref, tgt_ref, w_ref, out_ref = refs
        pair_ref = None

    i = pl.program_id(0)

    @pl.when(i == 0)
    def _init():
        out_ref[...] = jnp.full((8, 128), jnp.inf if k_pred else 0.0, jnp.float32)

    # Native-dtype DMA; upcast in-register (free under the HBM bound).
    p = pred_ref[...].astype(jnp.float32)          # (bb, K*2T)
    t = tgt_ref[...].astype(jnp.float32)           # (bb, 2T)

    # Hoisted broadcasts (JAX does not CSE broadcast_in_dim inside the k loop).
    if loss_fun == "RMSE":
        pair = pair_ref[...]                                   # (2T, T)
        w_b = jnp.broadcast_to(w_ref[...], (bb, T))            # w[t] * scale
    else:
        w_b = jnp.broadcast_to(w_ref[...], (bb, twoT))         # w[t] * scale per lane

    per_k = []
    for k in range(K):                     # K is tiny -> trace-time unroll
        d = p[:, k * twoT:(k + 1) * twoT] - t                  # (bb, 2T)
        if loss_fun == "SmoothL1":         # beta = 1.0 (PyTorch default)
            ad = jnp.abs(d)
            el = jnp.where(ad < 1.0, 0.5 * d * d, ad - 0.5)
        else:                              # MSE / RMSE
            el = d * d
        if loss_fun == "RMSE":
            # Pair-sum x/y lanes with a tiny 0/1 matmul (MXU is idle here),
            # sqrt per (b, t), then the weighted time reduction.
            s = jnp.dot(el, pair, preferred_element_type=jnp.float32)   # (bb, T)
            s = jnp.sqrt(s + 1e-6)
            per_k.append(jnp.sum(s * w_b, axis=1, keepdims=True))       # (bb, 1)
        else:
            per_k.append(jnp.sum(el * w_b, axis=1, keepdims=True))      # (bb, 1)

    red = per_k[0]
    for v in per_k[1:]:
        red = jnp.minimum(red, v) if k_pred else red + v       # over the K modes

    if needs_mask:                         # trailing partial block over B
        rows = jax.lax.broadcasted_iota(jnp.int32, (bb, 1), 0) + i * bb
        red = jnp.where(rows < B, red, jnp.inf if k_pred else 0.0)

    if k_pred:
        out_ref[...] = jnp.minimum(out_ref[...], jnp.min(red))
    else:
        out_ref[...] = out_ref[...] + jnp.sum(red)


# ----------------------------------------------------------------------------
# Pallas path of Loss.forward
# ----------------------------------------------------------------------------
def _pallas_loss(pred, target, weights, *, k_pred, loss_fun):
    B, K, T, C = pred.shape
    assert C == 2
    twoT = 2 * T
    L = K * twoT

    # Free contiguous reshapes -- no transposes, no K-broadcast, no upcast.
    pred2 = pred.reshape(B, L)
    tgt2 = target.reshape(B, twoT)

    scale = (1.0 / T) if k_pred else (1.0 / (B * K * T))
    if weights is None:
        w_t = jnp.full((T,), scale, jnp.float32)
    else:
        w_t = weights.astype(jnp.float32) * scale

    bb, nb = _pick_rows(B, pred.dtype.itemsize, target.dtype.itemsize, L)
    needs_mask = (nb * bb != B)

    in_specs = [
        pl.BlockSpec((bb, L), lambda i: (i, 0)),
        pl.BlockSpec((bb, twoT), lambda i: (i, 0)),
    ]
    args = [pred2, tgt2]

    if loss_fun == "RMSE":
        pair = np.zeros((twoT, T), np.float32)
        pair[2 * np.arange(T), np.arange(T)] = 1.0
        pair[2 * np.arange(T) + 1, np.arange(T)] = 1.0
        in_specs += [pl.BlockSpec((twoT, T), lambda i: (0, 0)),
                     pl.BlockSpec((1, T), lambda i: (0, 0))]
        args += [jnp.asarray(pair), w_t.reshape(1, T)]
    else:
        wl = jnp.repeat(w_t, 2).reshape(1, twoT)     # [w0,w0,w1,w1,...] * scale
        in_specs += [pl.BlockSpec((1, twoT), lambda i: (0, 0))]
        args += [wl]

    kern = functools.partial(_loss_kernel, K=K, T=T, B=B, bb=bb,
                             loss_fun=loss_fun, k_pred=k_pred,
                             needs_mask=needs_mask)

    out = pl.pallas_call(
        kern,
        out_shape=jax.ShapeDtypeStruct((8, 128), jnp.float32),
        grid=(nb,),
        in_specs=in_specs,
        out_specs=pl.BlockSpec((8, 128), lambda i: (0, 0)),
        compiler_params=pltpu.CompilerParams(
            dimension_semantics=("arbitrary",)),   # resident accumulator tile
    )(*args)
    return out[0, 0]


# ----------------------------------------------------------------------------
# Pure-jnp loss (fast path for small problems + reference for checking)
# ----------------------------------------------------------------------------
def _loss_jnp(pred, target, weights, *, k_pred, loss_fun):
    t = target[:, None, :, :].astype(jnp.float32)
    d = pred.astype(jnp.float32) - t
    if loss_fun == "SmoothL1":
        ad = jnp.abs(d)
        per = jnp.where(ad < 1.0, 0.5 * d * d, ad - 0.5)
    else:
        per = d * d
    loss = per[..., 0] + per[..., 1]
    if loss_fun == "RMSE":
        loss = jnp.sqrt(loss + 1e-6)
    if weights is not None:
        loss = loss * weights.astype(jnp.float32).reshape(1, 1, -1)
    if k_pred:
        return loss.mean(axis=-1).min()
    return loss.mean()


# ----------------------------------------------------------------------------
# Wrapper (equivalent of Loss.forward)
# ----------------------------------------------------------------------------
@functools.partial(jax.jit, static_argnames=("k_pred", "loss_fun", "force_pallas"))
def loss_forward(pred, target, weights=None, *, k_pred=False,
                 loss_fun=LOSS_FUN, force_pallas=False):
    """pred: [B, K, T, 2], target: [B, T, 2] -> scalar loss (float32)."""
    if loss_fun not in ("MSE", "RMSE", "SmoothL1"):
        raise ValueError(f"unknown loss_fun: {loss_fun}")
    if (not force_pallas) and pred.size * pred.dtype.itemsize < _SMALL_BYTES:
        # Small-problem fast path: one XLA fusion beats the kernel's dispatch
        # + pipeline overhead outright at these sizes.
        return _loss_jnp(pred, target, weights, k_pred=k_pred, loss_fun=loss_fun)
    return _pallas_loss(pred, target, weights, k_pred=k_pred, loss_fun=loss_fun)


# ----------------------------------------------------------------------------
# Self-test
# ----------------------------------------------------------------------------
if __name__ == "__main__":
    T = PRED_LEN
    w = make_weights()
    key = jax.random.PRNGKey(0)

    # (B, K, k_pred, loss_fun, weights, force_pallas)
    cases = [
        (2,    4, False, "MSE",      w,    True),   # tiny, weighted mean
        (2,    4, True,  "MSE",      w,    True),   # tiny, per-traj mean + min
        (16,   4, False, "SmoothL1", None, True),   # unweighted SmoothL1
        (16,   4, True,  "RMSE",     w,    True),   # RMSE (pair-sum matmul path)
        (384,  6, True,  "MSE",      w,    True),   # single full-B block
        (5000, 6, False, "MSE",      w,    False),  # multi-block grid + tail mask
        (4099, 6, True,  "MSE",      None, False),  # multi-block k_pred + inf mask
        (64,   6, False, "MSE",      w,    False),  # exercises the pure-XLA fast path
    ]

    for idx, (B, K, k_pred, fun, wts, force) in enumerate(cases):
        kp, kt = jax.random.split(jax.random.fold_in(key, idx))
        pred = jax.random.normal(kp, (B, K, T, 2), dtype=jnp.float32)
        target = jax.random.normal(kt, (B, T, 2), dtype=jnp.float32)

        out = jax.block_until_ready(
            loss_forward(pred, target, wts, k_pred=k_pred, loss_fun=fun,
                         force_pallas=force))
        ref = _loss_jnp(pred, target, wts, k_pred=k_pred, loss_fun=fun)

        assert jnp.allclose(out, ref, rtol=1e-4, atol=1e-5), \
            (idx, float(out), float(ref))

    print("KERNEL_OK")
</pallas_src>

<mosaic_0001>
module attributes {stable_mosaic.version = 11 : i64} {
  func.func @_loss_kernel(%arg0: i32, %arg1: memref<2x64xf32, #tpu.memory_space<vmem>>, %arg2: memref<2x16xf32, #tpu.memory_space<vmem>>, %arg3: memref<1x16xf32, #tpu.memory_space<vmem>>, %arg4: memref<8x128xf32, #tpu.memory_space<vmem>>) attributes {dimension_semantics = [#tpu.dimension_semantics<arbitrary>], iteration_bounds = array<i64: 1>, scalar_prefetch = 0 : i64, scratch_operands = 0 : i64, tpu.core_type = #tpu.core_type<tc>, window_params = [{transform_indices = @transform_0, window_bounds = array<i64: 2, 64>}, {transform_indices = @transform_1, window_bounds = array<i64: 2, 16>}, {pipeline_mode = #tpu.pipeline_mode<synchronous>, transform_indices = @transform_2, window_bounds = array<i64: 1, 16>}, {pipeline_mode = #tpu.pipeline_mode<synchronous>, transform_indices = @transform_3, window_bounds = array<i64: 8, 128>}]} {
    %c0_i32 = arith.constant 0 : i32
    %0 = arith.cmpi eq, %arg0, %c0_i32 : i32
    %1 = arith.extui %0 : i1 to i32
    %c0_i32_0 = arith.constant 0 : i32
    %2 = arith.cmpi ne, %1, %c0_i32_0 : i32
    scf.if %2 {
      %cst_14 = arith.constant 0.000000e+00 : f32
      %43 = vector.broadcast %cst_14 : f32 to vector<8x128xf32>
      %c0_15 = arith.constant 0 : index
      %c0_16 = arith.constant 0 : index
      %44 = vector.load %arg4[%c0_15, %c0_16] : memref<8x128xf32, #tpu.memory_space<vmem>>, vector<8x128xf32>
      tpu.vector_store %arg4[%c0_15, %c0_16], %43 {strides = array<i32>} : memref<8x128xf32, #tpu.memory_space<vmem>>, vector<8x128xf32>,
    } else {
    }
    %c0 = arith.constant 0 : index
    %c0_1 = arith.constant 0 : index
    %3 = vector.load %arg1[%c0, %c0_1] : memref<2x64xf32, #tpu.memory_space<vmem>>, vector<2x64xf32>
    %c0_2 = arith.constant 0 : index
    %c0_3 = arith.constant 0 : index
    %4 = vector.load %arg2[%c0_2, %c0_3] : memref<2x16xf32, #tpu.memory_space<vmem>>, vector<2x16xf32>
    %c0_4 = arith.constant 0 : index
    %c0_5 = arith.constant 0 : index
    %5 = vector.load %arg3[%c0_4, %c0_5] : memref<1x16xf32, #tpu.memory_space<vmem>>, vector<1x16xf32>
    %6 = vector.shape_cast %5 : vector<1x16xf32> to vector<1x16xf32>
    %7 = vector.broadcast %6 : vector<1x16xf32> to vector<2x16xf32>
    %8 = vector.extract_strided_slice %3 {offsets = [0, 0], sizes = [2, 16], strides = [1, 1]} : vector<2x64xf32> to vector<2x16xf32>
    %9 = arith.subf %8, %4 : vector<2x16xf32>
    %10 = arith.mulf %9, %9 : vector<2x16xf32>
    %11 = arith.mulf %10, %7 : vector<2x16xf32>
    %cst = arith.constant dense<0.000000e+00> : vector<2xf32>
    %12 = vector.multi_reduction <add>, %11, %cst [1] : vector<2x16xf32> to vector<2xf32>
    %13 = vector.shape_cast %12 : vector<2xf32> to vector<2x1xf32>
    %14 = vector.extract_strided_slice %3 {offsets = [0, 16], sizes = [2, 16], strides = [1, 1]} : vector<2x64xf32> to vector<2x16xf32>
    %15 = arith.subf %14, %4 : vector<2x16xf32>
    %16 = arith.mulf %15, %15 : vector<2x16xf32>
    %17 = arith.mulf %16, %7 : vector<2x16xf32>
    %cst_6 = arith.constant dense<0.000000e+00> : vector<2xf32>
    %18 = vector.multi_reduction <add>, %17, %cst_6 [1] : vector<2x16xf32> to vector<2xf32>
    %19 = vector.shape_cast %18 : vector<2xf32> to vector<2x1xf32>
    %20 = vector.extract_strided_slice %3 {offsets = [0, 32], sizes = [2, 16], strides = [1, 1]} : vector<2x64xf32> to vector<2x16xf32>
    %21 = arith.subf %20, %4 : vector<2x16xf32>
    %22 = arith.mulf %21, %21 : vector<2x16xf32>
    %23 = arith.mulf %22, %7 : vector<2x16xf32>
    %cst_7 = arith.constant dense<0.000000e+00> : vector<2xf32>
    %24 = vector.multi_reduction <add>, %23, %cst_7 [1] : vector<2x16xf32> to vector<2xf32>
    %25 = vector.shape_cast %24 : vector<2xf32> to vector<2x1xf32>
    %26 = vector.extract_strided_slice %3 {offsets = [0, 48], sizes = [2, 16], strides = [1, 1]} : vector<2x64xf32> to vector<2x16xf32>
    %27 = arith.subf %26, %4 : vector<2x16xf32>
    %28 = arith.mulf %27, %27 : vector<2x16xf32>
    %29 = arith.mulf %28, %7 : vector<2x16xf32>
    %cst_8 = arith.constant dense<0.000000e+00> : vector<2xf32>
    %30 = vector.multi_reduction <add>, %29, %cst_8 [1] : vector<2x16xf32> to vector<2xf32>
    %31 = vector.shape_cast %30 : vector<2xf32> to vector<2x1xf32>
    %32 = arith.addf %13, %19 : vector<2x1xf32>
    %33 = arith.addf %32, %25 : vector<2x1xf32>
    %34 = arith.addf %33, %31 : vector<2x1xf32>
    %c0_9 = arith.constant 0 : index
    %c0_10 = arith.constant 0 : index
    %35 = vector.load %arg4[%c0_9, %c0_10] : memref<8x128xf32, #tpu.memory_space<vmem>>, vector<8x128xf32>
    %36 = vector.shape_cast %34 : vector<2x1xf32> to vector<1x2x1xf32>
    %cst_11 = arith.constant dense<0.000000e+00> : vector<1xf32>
    %37 = vector.multi_reduction <add>, %36, %cst_11 [1, 2] : vector<1x2x1xf32> to vector<1xf32>
    %38 = vector.shape_cast %37 : vector<1xf32> to vector<1x1x1xf32>
    %39 = vector.extract %38[0, 0, 0] : f32 from vector<1x1x1xf32>
    %40 = vector.broadcast %39 : f32 to vector<8x128xf32>
    %41 = arith.addf %35, %40 : vector<8x128xf32>
    %c0_12 = arith.constant 0 : index
    %c0_13 = arith.constant 0 : index
    %42 = vector.load %arg4[%c0_12, %c0_13] : memref<8x128xf32, #tpu.memory_space<vmem>>, vector<8x128xf32>
    tpu.vector_store %arg4[%c0_12, %c0_13], %41 {strides = array<i32>} : memref<8x128xf32, #tpu.memory_space<vmem>>, vector<8x128xf32>,
    return
  }
  func.func @transform_0(%arg0: i32) -> (i32, i32) {
    %c0_i32 = arith.constant 0 : i32
    %c0_i32_0 = arith.constant 0 : i32
    return %arg0, %c0_i32 : i32, i32
  }
  func.func @transform_1(%arg0: i32) -> (i32, i32) {
    %c0_i32 = arith.constant 0 : i32
    %c0_i32_0 = arith.constant 0 : i32
    return %arg0, %c0_i32 : i32, i32
  }
  func.func @transform_2(%arg0: i32) -> (i32, i32) {
    %c0_i32 = arith.constant 0 : i32
    %c0_i32_0 = arith.constant 0 : i32
    %c0_i32_1 = arith.constant 0 : i32
    return %c0_i32, %c0_i32_0 : i32, i32
  }
  func.func @transform_3(%arg0: i32) -> (i32, i32) {
    %c0_i32 = arith.constant 0 : i32
    %c0_i32_0 = arith.constant 0 : i32
    %c0_i32_1 = arith.constant 0 : i32
    return %c0_i32, %c0_i32_0 : i32, i32
  }
}

</mosaic_0001>

<llo_original>
// kernel: loss_forward.1
$region0: #{loss_forward.1}
  #allocation0 [shape = 'u32[]', space=smem, size = 0x4, offset = 0x4, fixed_abs, tag = 'smem constant byte address 0x4 - core index']
  #allocation1 [shape = 'u32[144,128]{1,0:T(1,128)}', space=vmem, size = 0x12000, scoped, tag = 'internal scratch']
  %s0 = inlined_call_operand.vmem [shape: f32[2,64], index: 0, kind: input, shape index: {}]
  %s1 = inlined_call_operand.vmem [shape: f32[2,16], index: 1, kind: input, shape index: {}]
  %s2 = inlined_call_operand.vmem [shape: f32[1,16], index: 2, kind: input, shape index: {}]
  %s3 = inlined_call_operand.vmem [shape: f32[8,128], index: 3, kind: output, shape index: {}]
  %s4 = sld [smem:[#allocation0]]
  $region26: #{loss_forward.1} parent=0
    _
  %s6 = ssub.s32 1, %s4
  %s7 = scalar_select 0, %s6, %s4
  // Predicated region
  $region2: #{loss_forward.1} parent=0 // pred_check
    _
  $region3: #{loss_forward.1} parent=0 // pred_check_branch
    %9 = sbr.rel (0) target = $region5
  $region4: #{loss_forward.1} parent=0 // pred_region
    _
  $region5: #{loss_forward.1} parent=0 // pred_fallthru
    _
  // Predicated region
  $region6: #{loss_forward.1} parent=0 // pred_check
    _
  $region7: #{loss_forward.1} parent=0 // pred_check_branch
    %11 = sbr.rel (0) target = $region9
  $region8: #{loss_forward.1} parent=0 // pred_region
    _
  $region9: #{loss_forward.1} parent=0 // pred_fallthru
    _
  // Predicated region
  $region10: #{loss_forward.1} parent=0 // pred_check
    _
  $region11: #{loss_forward.1} parent=0 // pred_check_branch
    %13 = sbr.rel (0) target = $region13
  $region12: #{loss_forward.1} parent=0 // pred_region
    _
  $region13: #{loss_forward.1} parent=0 // pred_fallthru
    _
  %p14 = scmp.eq.s32.totalorder 0, 0
  // Predicated region
  $region14: #{loss_forward.1} parent=0 // pred_check
    %p15 = pneg %p14
  $region15: #{loss_forward.1} parent=0 // pred_check_branch
    %17 = sbr.rel (%p15) target = $region17
  $region16: #{loss_forward.1} parent=0 // pred_region
    %18 = vst [vmem:[%s3] sm:$0xff] 0.0
  $region17: #{loss_forward.1} parent=0 // pred_fallthru
    _
  %v19 = vld [vmem:[%s0] sm:$0x3]
  %v20 = vld [vmem:[%s1] sm:$0x3]
  %v21 = vld [vmem:[%s2] sm:$0x1]
  %v23 = vlaneseq
  %v24 = vshrl.u32 %v23, 7
  %v25 = vsub.s32 0, %v24
  %v26 = vrot.slane %v21, %v25
  %v28 = vsub.f32 %v19, %v20
  %v29 = vmul.f32 %v28, %v28
  %v30 = vmul.f32 %v29, %v26
  %vm31 = vcmask 123904
  %v32 = vsel %vm31, %v30, 0.0
  %33 = vadd.xlane.f32.xlu0 %v32
  %v34 = vpop.xlane.xlu0 %33
  %36 = vrot.lane.b32.xlu0 %v20, 16
  %v37 = vpop.permute.xlu0 %36
  %v39 = vsub.f32 %v19, %v37
  %v40 = vmul.f32 %v39, %v39
  %41 = vrot.lane.b32.xlu0 %v26, 16
  %v42 = vpop.permute.xlu0 %41
  %v44 = vmul.f32 %v40, %v42
  %46 = vrot.lane.b32.xlu0 %v44, 112
  %v47 = vpop.permute.xlu0 %46
  %v49 = vsel %vm31, %v47, 0.0
  %50 = vadd.xlane.f32.xlu0 %v49
  %v51 = vpop.xlane.xlu0 %50
  %52 = vrot.lane.b32.xlu0 %v20, 32
  %v53 = vpop.permute.xlu0 %52
  %v55 = vsub.f32 %v19, %v53
  %v56 = vmul.f32 %v55, %v55
  %57 = vrot.lane.b32.xlu0 %v26, 32
  %v58 = vpop.permute.xlu0 %57
  %v60 = vmul.f32 %v56, %v58
  %62 = vrot.lane.b32.xlu0 %v60, 96
  %v63 = vpop.permute.xlu0 %62
  %v65 = vsel %vm31, %v63, 0.0
  %66 = vadd.xlane.f32.xlu0 %v65
  %v67 = vpop.xlane.xlu0 %66
  %68 = vrot.lane.b32.xlu0 %v20, 48
  %v69 = vpop.permute.xlu0 %68
  %v71 = vsub.f32 %v19, %v69
  %v72 = vmul.f32 %v71, %v71
  %73 = vrot.lane.b32.xlu0 %v26, 48
  %v74 = vpop.permute.xlu0 %73
  %v76 = vmul.f32 %v72, %v74
  %78 = vrot.lane.b32.xlu0 %v76, 80
  %v79 = vpop.permute.xlu0 %78
  %v81 = vsel %vm31, %v79, 0.0
  %82 = vadd.xlane.f32.xlu0 %v81
  %v83 = vpop.xlane.xlu0 %82
  %v84 = vadd.f32 %v34, %v51
  %v85 = vadd.f32 %v84, %v67
  %v86 = vadd.f32 %v85, %v83
  %v87 = vld [vmem:[%s3] sm:$0xff]
  %vm88 = vcmask 1024
  %v89 = vsel %vm88, %v86, 0.0
  %90 = vadd.xlane.f32.xlu0 %v89
  %v91 = vpop.xlane.xlu0 %90
  %v92 = vrot.slane %v91, 4
  %v93 = vadd.f32 %v91, %v92
  %v94 = vrot.slane %v93, 2
  %v95 = vadd.f32 %v93, %v94
  %v96 = vrot.slane %v95, 1
  %v97 = vadd.f32 %v95, %v96
  %s98 = vtos %v97
  %v99 = vstv %s98
  %v100 = vadd.f32 %v87, %v99
  %101 = vst [vmem:[%s3] sm:$0xff] %v100
  // Predicated region
  $region18: #{loss_forward.1} parent=0 // pred_check
    _
  $region19: #{loss_forward.1} parent=0 // pred_check_branch
    %103 = sbr.rel (0) target = $region21
  $region20: #{loss_forward.1} parent=0 // pred_region
    _
  $region21: #{loss_forward.1} parent=0 // pred_fallthru
    _
  // Predicated region
  $region22: #{loss_forward.1} parent=0 // pred_check
    _
  $region23: #{loss_forward.1} parent=0 // pred_check_branch
    %105 = sbr.rel (0) target = $region25
  $region24: #{loss_forward.1} parent=0 // pred_region
    _
  $region25: #{loss_forward.1} parent=0 // pred_fallthru
    _

</llo_original>
